<compile_context>
chip_gen: v7x
topology: tpu7x:2x2x1
jax: 0.10.0
libtpu: 0.0.40
codegen_flags: <defaults>
</compile_context>

<pallas_src>
import functools

import jax
import jax.numpy as jnp
from jax import lax
from jax.experimental import pallas as pl
from jax.experimental.pallas import tpu as pltpu

VOCAB_SIZE = 50
EMBEDDING_DIM = 16
CONTEXT_SIZE = 2
HIDDEN = 128       # fixed by the module definition
BATCH = 256        # contexts per call in the demo
BLOCK_B = 128      # batch-tile rows per grid step

_NEG = -1e30       # effectively -inf for padded vocab lanes (exp underflows to 0)


def _round_up(x, m):
    return (x + m - 1) // m * m


def _ngram_kernel(context_size, v_pad_rows,
                  idx_ref, t_ref, b1_ref, w2_ref, b2_ref, out_ref):
    tb = idx_ref.shape[0]          # batch-tile rows (static)
    k1 = t_ref.shape[0]            # context_size * v_pad_rows (static)

    idx = idx_ref[...]             # (TB, C) int32 token ids

    # Concatenated one-hot selector (TB, C*Vp): segment k is one-hot of token k.
    # Pure VPU work (iota + compare + add).
    col = lax.broadcasted_iota(jnp.int32, (tb, k1), 1)
    onehot = jnp.zeros((tb, k1), jnp.float32)
    for k in range(context_size):                      # static, tiny trip count
        tgt = idx[:, k:k + 1] + k * v_pad_rows         # (TB, 1)
        onehot = onehot + (col == tgt).astype(jnp.float32)

    # Embedding lookup + linear1 fused: one (TB, C*Vp) @ (C*Vp, 128) MXU matmul.
    h = jnp.dot(onehot, t_ref[...], preferred_element_type=jnp.float32)
    h = jnp.maximum(h + b1_ref[...], 0.0)

    # linear2: (TB, 128) @ (128, Vp_out), lane-dense output.
    logits = jnp.dot(h, w2_ref[...], preferred_element_type=jnp.float32) + b2_ref[...]

    # Stable log-softmax; padded lanes carry a -1e30 bias so they drop out.
    m = jnp.max(logits, axis=-1, keepdims=True)
    z = logits - m
    lse = jnp.log(jnp.sum(jnp.exp(z), axis=-1, keepdims=True))
    out_ref[...] = z - lse


def ngram_forward_batched(token_ids, embeddings, w1, b1, w2, b2, *, block_b=BLOCK_B):
    """token_ids: (B, context_size) int32.  Returns (B, vocab_size) f32 log-probs;
    row b equals NGramLanguageModeler.forward(token_ids[b])."""
    bsz, context_size = token_ids.shape
    vocab_size, emb_dim = embeddings.shape
    hidden = w1.shape[1]

    v_pad_rows = _round_up(vocab_size, 64)      # one-hot segment width
    v_pad_out = _round_up(vocab_size, 128)      # lane-dense vocab/output width

    # Precompute per-position projected tables T_k = emb @ W1[k*E:(k+1)*E, :].
    tables = []
    for k in range(context_size):
        t_k = embeddings @ w1[k * emb_dim:(k + 1) * emb_dim, :]     # (V, H)
        tables.append(jnp.pad(t_k, ((0, v_pad_rows - vocab_size), (0, 0))))
    t_cat = jnp.concatenate(tables, axis=0)                          # (C*Vp, H)

    b1_2d = b1.reshape(1, hidden)
    w2_p = jnp.pad(w2, ((0, 0), (0, v_pad_out - vocab_size)))
    b2_p = jnp.pad(b2.reshape(1, vocab_size),
                   ((0, 0), (0, v_pad_out - vocab_size)),
                   constant_values=_NEG)

    # Pad batch to a multiple of the batch tile.
    bsz_p = _round_up(bsz, block_b)
    idx_p = jnp.pad(token_ids.astype(jnp.int32), ((0, bsz_p - bsz), (0, 0)))

    kernel = functools.partial(_ngram_kernel, context_size, v_pad_rows)
    resident = lambda i: (0, 0)   # constant index_map -> block stays VMEM-resident

    out = pl.pallas_call(
        kernel,
        out_shape=jax.ShapeDtypeStruct((bsz_p, v_pad_out), jnp.float32),
        grid=(bsz_p // block_b,),
        in_specs=[
            pl.BlockSpec((block_b, context_size), lambda i: (i, 0)),       # ids (stream)
            pl.BlockSpec((context_size * v_pad_rows, hidden), resident),   # T_cat
            pl.BlockSpec((1, hidden), resident),                           # b1
            pl.BlockSpec((hidden, v_pad_out), resident),                   # w2 (padded)
            pl.BlockSpec((1, v_pad_out), resident),                        # b2 (padded)
        ],
        out_specs=pl.BlockSpec((block_b, v_pad_out), lambda i: (i, 0)),
        compiler_params=pltpu.CompilerParams(
            dimension_semantics=("parallel",)),
    )(idx_p, t_cat, b1_2d, w2_p, b2_p)

    return out[:bsz, :vocab_size]


def ngram_forward(inputs, embeddings, w1, b1, w2, b2):
    """Single-context wrapper matching the torch forward:
    inputs (context_size,) -> (1, vocab_size) log-probs."""
    return ngram_forward_batched(inputs[None, :], embeddings, w1, b1, w2, b2)


def _reference(token_ids, embeddings, w1, b1, w2, b2):
    bsz = token_ids.shape[0]
    embeds = embeddings[token_ids].reshape(bsz, -1)
    h = jnp.maximum(embeds @ w1 + b1, 0.0)
    logits = h @ w2 + b2
    return jax.nn.log_softmax(logits, axis=-1)


if __name__ == "__main__":
    key = jax.random.PRNGKey(0)
    k_emb, k_w1, k_b1, k_w2, k_b2, k_idx = jax.random.split(key, 6)

    embeddings = jax.random.normal(k_emb, (VOCAB_SIZE, EMBEDDING_DIM), jnp.float32)
    w1 = jax.random.normal(k_w1, (CONTEXT_SIZE * EMBEDDING_DIM, HIDDEN), jnp.float32) * 0.1
    b1 = jax.random.normal(k_b1, (HIDDEN,), jnp.float32) * 0.1
    w2 = jax.random.normal(k_w2, (HIDDEN, VOCAB_SIZE), jnp.float32) * 0.1
    b2 = jax.random.normal(k_b2, (VOCAB_SIZE,), jnp.float32) * 0.1

    token_ids = jax.random.randint(k_idx, (BATCH, CONTEXT_SIZE), 0, VOCAB_SIZE, jnp.int32)

    log_probs = ngram_forward_batched(token_ids, embeddings, w1, b1, w2, b2)
    jax.block_until_ready(log_probs)

    ref = _reference(token_ids, embeddings, w1, b1, w2, b2)
    assert log_probs.shape == (BATCH, VOCAB_SIZE)
    assert jnp.allclose(log_probs, ref, atol=1e-4, rtol=1e-4), "batched mismatch vs reference"

    # Single-context path (original module signature).
    one = ngram_forward(token_ids[0], embeddings, w1, b1, w2, b2)
    jax.block_until_ready(one)
    assert one.shape == (1, VOCAB_SIZE)
    assert jnp.allclose(one, ref[0:1], atol=1e-4, rtol=1e-4), "single-example mismatch"

    print("KERNEL_OK")
</pallas_src>

<mosaic_0001>
module attributes {stable_mosaic.version = 11 : i64} {
  func.func @_ngram_kernel(%arg0: i32, %arg1: memref<128x2xi32, #tpu.memory_space<vmem>>, %arg2: memref<128x128xf32, #tpu.memory_space<vmem>>, %arg3: memref<1x128xf32, #tpu.memory_space<vmem>>, %arg4: memref<128x128xf32, #tpu.memory_space<vmem>>, %arg5: memref<1x128xf32, #tpu.memory_space<vmem>>, %arg6: memref<128x128xf32, #tpu.memory_space<vmem>>) attributes {dimension_semantics = [#tpu.dimension_semantics<parallel>], iteration_bounds = array<i64: 2>, scalar_prefetch = 0 : i64, scratch_operands = 0 : i64, tpu.core_type = #tpu.core_type<tc>, window_params = [{transform_indices = @transform_0, window_bounds = array<i64: 128, 2>}, {pipeline_mode = #tpu.pipeline_mode<synchronous>, transform_indices = @transform_1, window_bounds = array<i64: 128, 128>}, {pipeline_mode = #tpu.pipeline_mode<synchronous>, transform_indices = @transform_2, window_bounds = array<i64: 1, 128>}, {pipeline_mode = #tpu.pipeline_mode<synchronous>, transform_indices = @transform_3, window_bounds = array<i64: 128, 128>}, {pipeline_mode = #tpu.pipeline_mode<synchronous>, transform_indices = @transform_4, window_bounds = array<i64: 1, 128>}, {transform_indices = @transform_5, window_bounds = array<i64: 128, 128>}]} {
    %c0 = arith.constant 0 : index
    %c0_0 = arith.constant 0 : index
    %0 = vector.load %arg1[%c0, %c0_0] : memref<128x2xi32, #tpu.memory_space<vmem>>, vector<128x2xi32>
    %1 = tpu.iota {dimensions = array<i32: 1>} : vector<128x128xi32>
    %cst = arith.constant 0.000000e+00 : f32
    %2 = vector.broadcast %cst : f32 to vector<128x128xf32>
    %3 = vector.extract_strided_slice %0 {offsets = [0, 0], sizes = [128, 1], strides = [1, 1]} : vector<128x2xi32> to vector<128x1xi32>
    %c0_i32 = arith.constant 0 : i32
    %4 = vector.broadcast %c0_i32 : i32 to vector<128x1xi32>
    %5 = arith.addi %3, %4 : vector<128x1xi32>
    %6 = vector.broadcast %5 : vector<128x1xi32> to vector<128x128xi32>
    %7 = arith.cmpi eq, %1, %6 : vector<128x128xi32>
    %8 = arith.extui %7 : vector<128x128xi1> to vector<128x128xi32>
    %9 = arith.sitofp %8 : vector<128x128xi32> to vector<128x128xf32>
    %10 = arith.addf %2, %9 : vector<128x128xf32>
    %11 = vector.extract_strided_slice %0 {offsets = [0, 1], sizes = [128, 1], strides = [1, 1]} : vector<128x2xi32> to vector<128x1xi32>
    %c64_i32 = arith.constant 64 : i32
    %12 = vector.broadcast %c64_i32 : i32 to vector<128x1xi32>
    %13 = arith.addi %11, %12 : vector<128x1xi32>
    %14 = vector.broadcast %13 : vector<128x1xi32> to vector<128x128xi32>
    %15 = arith.cmpi eq, %1, %14 : vector<128x128xi32>
    %16 = arith.extui %15 : vector<128x128xi1> to vector<128x128xi32>
    %17 = arith.sitofp %16 : vector<128x128xi32> to vector<128x128xf32>
    %18 = arith.addf %10, %17 : vector<128x128xf32>
    %c0_1 = arith.constant 0 : index
    %c0_2 = arith.constant 0 : index
    %19 = vector.load %arg2[%c0_1, %c0_2] : memref<128x128xf32, #tpu.memory_space<vmem>>, vector<128x128xf32>
    %cst_3 = arith.constant dense<0.000000e+00> : vector<128x128xf32>
    %20 = tpu.matmul %18, %19, %cst_3 {dimension_numbers = #tpu.dot_dimension_numbers<[1], [0], [0], [1], [0, 0, 1, 1], [], []>} : vector<128x128xf32>, vector<128x128xf32>, vector<128x128xf32> -> vector<128x128xf32>
    %c0_4 = arith.constant 0 : index
    %c0_5 = arith.constant 0 : index
    %21 = vector.load %arg3[%c0_4, %c0_5] : memref<1x128xf32, #tpu.memory_space<vmem>>, vector<1x128xf32>
    %22 = vector.broadcast %21 : vector<1x128xf32> to vector<128x128xf32>
    %23 = arith.addf %20, %22 : vector<128x128xf32>
    %cst_6 = arith.constant 0.000000e+00 : f32
    %24 = vector.broadcast %cst_6 : f32 to vector<128x128xf32>
    %25 = arith.maximumf %23, %24 : vector<128x128xf32>
    %c0_7 = arith.constant 0 : index
    %c0_8 = arith.constant 0 : index
    %26 = vector.load %arg4[%c0_7, %c0_8] : memref<128x128xf32, #tpu.memory_space<vmem>>, vector<128x128xf32>
    %cst_9 = arith.constant dense<0.000000e+00> : vector<128x128xf32>
    %27 = tpu.matmul %25, %26, %cst_9 {dimension_numbers = #tpu.dot_dimension_numbers<[1], [0], [0], [1], [0, 0, 1, 1], [], []>} : vector<128x128xf32>, vector<128x128xf32>, vector<128x128xf32> -> vector<128x128xf32>
    %c0_10 = arith.constant 0 : index
    %c0_11 = arith.constant 0 : index
    %28 = vector.load %arg5[%c0_10, %c0_11] : memref<1x128xf32, #tpu.memory_space<vmem>>, vector<1x128xf32>
    %29 = vector.broadcast %28 : vector<1x128xf32> to vector<128x128xf32>
    %30 = arith.addf %27, %29 : vector<128x128xf32>
    %cst_12 = arith.constant dense<0xFF800000> : vector<128xf32>
    %31 = vector.multi_reduction <maximumf>, %30, %cst_12 [1] : vector<128x128xf32> to vector<128xf32>
    %32 = vector.shape_cast %31 : vector<128xf32> to vector<128x1xf32>
    %33 = vector.broadcast %32 : vector<128x1xf32> to vector<128x128xf32>
    %34 = arith.subf %30, %33 : vector<128x128xf32>
    %35 = math.exp %34 : vector<128x128xf32>
    %cst_13 = arith.constant dense<0.000000e+00> : vector<128xf32>
    %36 = vector.multi_reduction <add>, %35, %cst_13 [1] : vector<128x128xf32> to vector<128xf32>
    %37 = vector.shape_cast %36 : vector<128xf32> to vector<128x1xf32>
    %38 = math.log %37 : vector<128x1xf32>
    %39 = vector.broadcast %38 : vector<128x1xf32> to vector<128x128xf32>
    %40 = arith.subf %34, %39 : vector<128x128xf32>
    %c0_14 = arith.constant 0 : index
    %c0_15 = arith.constant 0 : index
    %41 = vector.load %arg6[%c0_14, %c0_15] : memref<128x128xf32, #tpu.memory_space<vmem>>, vector<128x128xf32>
    tpu.vector_store %arg6[%c0_14, %c0_15], %40 {strides = array<i32>} : memref<128x128xf32, #tpu.memory_space<vmem>>, vector<128x128xf32>,
    return
  }
  func.func @transform_0(%arg0: i32) -> (i32, i32) {
    %c0_i32 = arith.constant 0 : i32
    %c0_i32_0 = arith.constant 0 : i32
    return %arg0, %c0_i32 : i32, i32
  }
  func.func @transform_1(%arg0: i32) -> (i32, i32) {
    %c0_i32 = arith.constant 0 : i32
    %c0_i32_0 = arith.constant 0 : i32
    %c0_i32_1 = arith.constant 0 : i32
    return %c0_i32, %c0_i32_0 : i32, i32
  }
  func.func @transform_2(%arg0: i32) -> (i32, i32) {
    %c0_i32 = arith.constant 0 : i32
    %c0_i32_0 = arith.constant 0 : i32
    %c0_i32_1 = arith.constant 0 : i32
    return %c0_i32, %c0_i32_0 : i32, i32
  }
  func.func @transform_3(%arg0: i32) -> (i32, i32) {
    %c0_i32 = arith.constant 0 : i32
    %c0_i32_0 = arith.constant 0 : i32
    %c0_i32_1 = arith.constant 0 : i32
    return %c0_i32, %c0_i32_0 : i32, i32
  }
  func.func @transform_4(%arg0: i32) -> (i32, i32) {
    %c0_i32 = arith.constant 0 : i32
    %c0_i32_0 = arith.constant 0 : i32
    %c0_i32_1 = arith.constant 0 : i32
    return %c0_i32, %c0_i32_0 : i32, i32
  }
  func.func @transform_5(%arg0: i32) -> (i32, i32) {
    %c0_i32 = arith.constant 0 : i32
    %c0_i32_0 = arith.constant 0 : i32
    return %arg0, %c0_i32 : i32, i32
  }
}

</mosaic_0001>

<llo_original>
// kernel: tpu_custom_call.1
$region0: #{tpu_custom_call.1}
  #allocation0 [shape = 'u32[]', space=smem, size = 0x4, offset = 0x4, fixed_abs, tag = 'smem constant byte address 0x4 - core index']
  #allocation1 [shape = 'u32[144,128]{1,0:T(1,128)}', space=vmem, size = 0x12000, scoped, tag = 'internal scratch']
  %s0 = inlined_call_operand.vmem [shape: s32[256,2], index: 0, kind: input, shape index: {}]
  %s1 = inlined_call_operand.vmem [shape: f32[128,128], index: 1, kind: input, shape index: {}]
  %s2 = inlined_call_operand.vmem [shape: f32[1,128], index: 2, kind: input, shape index: {}]
  %s3 = inlined_call_operand.vmem [shape: f32[128,128], index: 3, kind: input, shape index: {}]
  %s4 = inlined_call_operand.vmem [shape: f32[1,128], index: 4, kind: input, shape index: {}]
  %s5 = inlined_call_operand.hbm [shape: f32[256,128], index: 5, kind: output, shape index: {}]
  %s6 = sld [smem:[#allocation0]]
  $region53: #{tpu_custom_call.1} parent=0
    _
  %s8 = ssub.s32 1, %s6
  %s9 = scalar_select 0, %s8, %s6
  $region1: #{tpu_custom_call.1} parent=0
    #allocation2 [shape = 'u8[131072]{0}', space=vmem, size = 0x20000, scoped, tag = 'output window, operand 0']
    #allocation3 [shape = 's32[2]{0}', space=sflag, size = 0x8, scoped, tag = 'scoped memory for tpu_custom_call.1']
    %10 = vsyncpa [#allocation3], 0
    %s11 = scalar_lea.sflag [#allocation3], 1
    %12 = vsyncpa %s11, 0
    loop: start=0, step=1, limit=4
    $region2: #{tpu_custom_call.1} parent=1 // loop_pre_header
      _
    $region3: #{tpu_custom_call.1} parent=1 // loop_header
      %s14 = sphi 0, %s18
      %p15 = scmp.ge.s32.totalorder %s14, 4
      %s24 = sphi 0, %s26
      %s27 = sphi 0, %s24
      %s28 = sphi 0, %s27
      %s44 = sphi 0, %s28
      %s48 = sphi 0, %s48
      %s50 = sphi 0, %s48
      %s51 = sphi 0, %s50
      %s65 = sphi 0, %s51
      %s69 = sphi 0, %s69
      %s71 = sphi 0, %s69
      %s72 = sphi 0, %s71
      %s86 = sphi 0, %s72
      %s90 = sphi 0, %s90
      %s92 = sphi 0, %s90
      %s93 = sphi 0, %s92
      %s107 = sphi 0, %s93
      %s111 = sphi 0, %s111
      %s113 = sphi 0, %s111
      %s114 = sphi 0, %s113
      %s128 = sphi 0, %s114
      %s134 = sphi 0, %s136
      %s137 = sphi 0, %s134
      %s138 = sphi 0, %s137
      %s154 = sphi 0, %s138
    $region4: #{tpu_custom_call.1} parent=1 // loop_header_branch
      %17 = sbr.rel (%p15) target = $region8
    $region5: #{tpu_custom_call.1} parent=1 // loop_body
      %s19 = ssub.s32 %s14, 1
      %s20 = ssub.s32 %s14, 2
      %s21 = sadd.s32 %s14, 1
      %s22 = ssub.s32 %s14, %s21
      %p23 = scmp.eq.s32.totalorder %s22, 0
      %s25 = sadd.s32 %s24, 1
      %s26 = scalar_select %p23, %s24, %s25
      %p29 = pneg %p23
      %p30 = scmp.eq.s32.totalorder %s14, 1
      %p31 = por %p29, %p30
      %p32 = scmp.ne.s32.totalorder %s24, %s27
      %p33 = scmp.eq.s32.totalorder %s14, 0
      %p34 = por %p32, %p33
      %p35 = scmp.ne.s32.totalorder %s24, %s27
      %p36 = scmp.eq.s32.totalorder %s19, 1
      %p37 = por %p35, %p36
      %p38 = scmp.ne.s32.totalorder %s27, %s28
      %p39 = scmp.eq.s32.totalorder %s19, 0
      %p40 = por %p38, %p39
      %p41 = scmp.ne.s32.totalorder %s27, %s28
      %p42 = scmp.eq.s32.totalorder %s20, 1
      %p43 = por %p41, %p42
      %p45 = scmp.ne.s32.totalorder %s28, %s44
      %p46 = scmp.eq.s32.totalorder %s20, 0
      %p47 = por %p45, %p46
      %s49 = sadd.s32 %s48, 1
      %p52 = scmp.eq.s32.totalorder %s14, 1
      %p53 = scmp.ne.s32.totalorder %s48, %s50
      %p54 = scmp.eq.s32.totalorder %s14, 0
      %p55 = por %p53, %p54
      %p56 = scmp.ne.s32.totalorder %s48, %s50
      %p57 = scmp.eq.s32.totalorder %s19, 1
      %p58 = por %p56, %p57
      %p59 = scmp.ne.s32.totalorder %s50, %s51
      %p60 = scmp.eq.s32.totalorder %s19, 0
      %p61 = por %p59, %p60
      %p62 = scmp.ne.s32.totalorder %s50, %s51
      %p63 = scmp.eq.s32.totalorder %s20, 1
      %p64 = por %p62, %p63
      %p66 = scmp.ne.s32.totalorder %s51, %s65
      %p67 = scmp.eq.s32.totalorder %s20, 0
      %p68 = por %p66, %p67
      %s70 = sadd.s32 %s69, 1
      %p73 = scmp.eq.s32.totalorder %s14, 1
      %p74 = scmp.ne.s32.totalorder %s69, %s71
      %p75 = scmp.eq.s32.totalorder %s14, 0
      %p76 = por %p74, %p75
      %p77 = scmp.ne.s32.totalorder %s69, %s71
      %p78 = scmp.eq.s32.totalorder %s19, 1
      %p79 = por %p77, %p78
      %p80 = scmp.ne.s32.totalorder %s71, %s72
      %p81 = scmp.eq.s32.totalorder %s19, 0
      %p82 = por %p80, %p81
      %p83 = scmp.ne.s32.totalorder %s71, %s72
      %p84 = scmp.eq.s32.totalorder %s20, 1
      %p85 = por %p83, %p84
      %p87 = scmp.ne.s32.totalorder %s72, %s86
      %p88 = scmp.eq.s32.totalorder %s20, 0
      %p89 = por %p87, %p88
      %s91 = sadd.s32 %s90, 1
      %p94 = scmp.eq.s32.totalorder %s14, 1
      %p95 = scmp.ne.s32.totalorder %s90, %s92
      %p96 = scmp.eq.s32.totalorder %s14, 0
      %p97 = por %p95, %p96
      %p98 = scmp.ne.s32.totalorder %s90, %s92
      %p99 = scmp.eq.s32.totalorder %s19, 1
      %p100 = por %p98, %p99
      %p101 = scmp.ne.s32.totalorder %s92, %s93
      %p102 = scmp.eq.s32.totalorder %s19, 0
      %p103 = por %p101, %p102
      %p104 = scmp.ne.s32.totalorder %s92, %s93
      %p105 = scmp.eq.s32.totalorder %s20, 1
      %p106 = por %p104, %p105
      %p108 = scmp.ne.s32.totalorder %s93, %s107
      %p109 = scmp.eq.s32.totalorder %s20, 0
      %p110 = por %p108, %p109
      %s112 = sadd.s32 %s111, 1
      %p115 = scmp.eq.s32.totalorder %s14, 1
      %p116 = scmp.ne.s32.totalorder %s111, %s113
      %p117 = scmp.eq.s32.totalorder %s14, 0
      %p118 = por %p116, %p117
      %p119 = scmp.ne.s32.totalorder %s111, %s113
      %p120 = scmp.eq.s32.totalorder %s19, 1
      %p121 = por %p119, %p120
      %p122 = scmp.ne.s32.totalorder %s113, %s114
      %p123 = scmp.eq.s32.totalorder %s19, 0
      %p124 = por %p122, %p123
      %p125 = scmp.ne.s32.totalorder %s113, %s114
      %p126 = scmp.eq.s32.totalorder %s20, 1
      %p127 = por %p125, %p126
      %p129 = scmp.ne.s32.totalorder %s114, %s128
      %p130 = scmp.eq.s32.totalorder %s20, 0
      %p131 = por %p129, %p130
      %s132 = ssub.s32 %s14, %s21
      %p133 = scmp.eq.s32.totalorder %s132, 0
      %s135 = sadd.s32 %s134, 1
      %s136 = scalar_select %p133, %s134, %s135
      %p139 = pneg %p133
      %p140 = scmp.eq.s32.totalorder %s14, 1
      %p141 = por %p139, %p140
      %p142 = scmp.ne.s32.totalorder %s134, %s137
      %p143 = scmp.eq.s32.totalorder %s14, 0
      %p144 = por %p142, %p143
      %p145 = scmp.ne.s32.totalorder %s134, %s137
      %p146 = scmp.eq.s32.totalorder %s19, 1
      %p147 = por %p145, %p146
      %p148 = scmp.ne.s32.totalorder %s137, %s138
      %p149 = scmp.eq.s32.totalorder %s19, 0
      %p150 = por %p148, %p149
      %p151 = scmp.ne.s32.totalorder %s137, %s138
      %p152 = scmp.eq.s32.totalorder %s20, 1
      %p153 = por %p151, %p152
      %p155 = scmp.ne.s32.totalorder %s138, %s154
      %p156 = scmp.eq.s32.totalorder %s20, 0
      %p157 = por %p155, %p156
      %p158 = scmp.le.s32.totalorder 1, %s14
      %p159 = scmp.lt.s32.totalorder %s14, 3
      %p160 = pnand %p158, %p159
      %p161 = pneg %p160
      // Predicated region
      $region9: #{tpu_custom_call.1} parent=5 // pred_check
        _
      $region10: #{tpu_custom_call.1} parent=5 // pred_check_branch
        %163 = sbr.rel (%p160) target = $region12
      $region11: #{tpu_custom_call.1} parent=5 // pred_region
        %s164 = ssub.s32 %s14, 1
        // Predicated region
        $region13: #{tpu_custom_call.1} parent=11 // pred_check
          %p165 = pneg %p61
        $region14: #{tpu_custom_call.1} parent=11 // pred_check_branch
          %167 = sbr.rel (%p165) target = $region16
        $region15: #{tpu_custom_call.1} parent=11 // pred_region
          _
        $region16: #{tpu_custom_call.1} parent=11 // pred_fallthru
          _
        // Predicated region
        $region17: #{tpu_custom_call.1} parent=11 // pred_check
          %p168 = pneg %p82
        $region18: #{tpu_custom_call.1} parent=11 // pred_check_branch
          %170 = sbr.rel (%p168) target = $region20
        $region19: #{tpu_custom_call.1} parent=11 // pred_region
          _
        $region20: #{tpu_custom_call.1} parent=11 // pred_fallthru
          _
        // Predicated region
        $region21: #{tpu_custom_call.1} parent=11 // pred_check
          %p171 = pneg %p103
        $region22: #{tpu_custom_call.1} parent=11 // pred_check_branch
          %173 = sbr.rel (%p171) target = $region24
        $region23: #{tpu_custom_call.1} parent=11 // pred_region
          _
        $region24: #{tpu_custom_call.1} parent=11 // pred_fallthru
          _
        // Predicated region
        $region25: #{tpu_custom_call.1} parent=11 // pred_check
          %p174 = pneg %p124
        $region26: #{tpu_custom_call.1} parent=11 // pred_check_branch
          %176 = sbr.rel (%p174) target = $region28
        $region27: #{tpu_custom_call.1} parent=11 // pred_region
          _
        $region28: #{tpu_custom_call.1} parent=11 // pred_fallthru
          _
      $region12: #{tpu_custom_call.1} parent=5 // pred_fallthru
        _
      %p177 = scmp.lt.s32.totalorder %s14, 2
      // Predicated region
      $region29: #{tpu_custom_call.1} parent=5 // pred_check
        %p178 = pneg %p177
      $region30: #{tpu_custom_call.1} parent=5 // pred_check_branch
        %180 = sbr.rel (%p178) target = $region32
      $region31: #{tpu_custom_call.1} parent=5 // pred_region
        // Predicated region
        $region33: #{tpu_custom_call.1} parent=31 // pred_check
          %p181 = pneg %p34
        $region34: #{tpu_custom_call.1} parent=31 // pred_check_branch
          %183 = sbr.rel (%p181) target = $region36
        $region35: #{tpu_custom_call.1} parent=31 // pred_region
          %s184 = smul.u32 16, %s14
          %p185 = scmp.lt.s32.totalorder %s184, 31
          %s186 = scalar_select %p185, %s184, 31
          %s187 = smul.addr %s186, 8
          %s188 = scalar_lea.vmem %s0, %s187
          %s189 = smul.u32 16, %s14
        $region36: #{tpu_custom_call.1} parent=31 // pred_fallthru
          _
      $region32: #{tpu_custom_call.1} parent=5 // pred_fallthru
        _
      %p190 = scmp.le.s32.totalorder 1, %s14
      %p191 = scmp.lt.s32.totalorder %s14, 3
      %p192 = pnand %p190, %p191
      %p193 = pneg %p192
      // Predicated region
      $region37: #{tpu_custom_call.1} parent=5 // pred_check
        _
      $region38: #{tpu_custom_call.1} parent=5 // pred_check_branch
        %195 = sbr.rel (%p192) target = $region40
      $region39: #{tpu_custom_call.1} parent=5 // pred_region
        %s196 = ssub.s32 %s14, 1
        %s197 = smul.u32 16, %s19
        %p198 = scmp.lt.s32.totalorder %s197, 31
        %s199 = scalar_select %p198, %s197, 31
        %s200 = smul.addr %s199, 8
        %s201 = scalar_lea.vmem %s0, %s200
        %p202 = pneg %p40
        %p203 = pneg %p37
        %p204 = pneg %p61
        %p205 = pneg %p58
        %p206 = pneg %p82
        %p207 = pneg %p79
        %p208 = pneg %p103
        %p209 = pneg %p100
        %p210 = pneg %p124
        %p211 = pneg %p121
        %p212 = pneg %p150
        %p213 = pneg %p147
        %s214 = sand.u32 %s137, 1
        %s215 = scalar_lea.sflag [#allocation3], %s214
        %s216 = sand.u32 %s137, 1
        %s217 = smul.addr %s216, 128
        %s218 = scalar_lea.vmem [#allocation2], %s217
        %s219 = smul.u32 16, %s19
        %p220 = scmp.lt.s32.totalorder %s219, 31
        %s221 = scalar_select %p220, %s219, 31
        %s222 = smul.addr %s221, 8
        %s223 = scalar_lea.vmem %s0, %s222
        %s224 = smul.u32 16, %s19
        %s225 = smul.u32 16, %s19
        %v226 = vld [vmem:[%s223] sm:$0xff]
        %v227 = vld [vmem:[%s223 + $0x8] sm:$0xff]
        %v228 = vld [vmem:[%s223 + $0x10] sm:$0xff]
        %v229 = vld [vmem:[%s223 + $0x18] sm:$0xff]
        %v230 = vld [vmem:[%s223 + $0x20] sm:$0xff]
        %v231 = vld [vmem:[%s223 + $0x28] sm:$0xff]
        %v232 = vld [vmem:[%s223 + $0x30] sm:$0xff]
        %v233 = vld [vmem:[%s223 + $0x38] sm:$0xff]
        %v234 = vld [vmem:[%s223 + $0x40] sm:$0xff]
        %v235 = vld [vmem:[%s223 + $0x48] sm:$0xff]
        %v236 = vld [vmem:[%s223 + $0x50] sm:$0xff]
        %v237 = vld [vmem:[%s223 + $0x58] sm:$0xff]
        %v238 = vld [vmem:[%s223 + $0x60] sm:$0xff]
        %v239 = vld [vmem:[%s223 + $0x68] sm:$0xff]
        %v240 = vld [vmem:[%s223 + $0x70] sm:$0xff]
        %v241 = vld [vmem:[%s223 + $0x78] sm:$0xff]
        %v242 = vlaneseq
        %v243 = vand.u32 %v242, 127
        %244 = vset.pattern.permute.xlu0 0
        %245 = vperm.xlu0 %244, %v226
        %v246 = vpop.permute.xlu0 %245
        %247 = vset.pattern.permute.xlu0 0
        %248 = vperm.xlu0 %247, %v227
        %v249 = vpop.permute.xlu0 %248
        %250 = vset.pattern.permute.xlu0 0
        %251 = vperm.xlu0 %250, %v228
        %v252 = vpop.permute.xlu0 %251
        %253 = vset.pattern.permute.xlu0 0
        %254 = vperm.xlu0 %253, %v229
        %v255 = vpop.permute.xlu0 %254
        %256 = vset.pattern.permute.xlu0 0
        %257 = vperm.xlu0 %256, %v230
        %v258 = vpop.permute.xlu0 %257
        %259 = vset.pattern.permute.xlu0 0
        %260 = vperm.xlu0 %259, %v231
        %v261 = vpop.permute.xlu0 %260
        %262 = vset.pattern.permute.xlu0 0
        %263 = vperm.xlu0 %262, %v232
        %v264 = vpop.permute.xlu0 %263
        %265 = vset.pattern.permute.xlu0 0
        %266 = vperm.xlu0 %265, %v233
        %v267 = vpop.permute.xlu0 %266
        %268 = vset.pattern.permute.xlu0 0
        %269 = vperm.xlu0 %268, %v234
        %v270 = vpop.permute.xlu0 %269
        %271 = vset.pattern.permute.xlu0 0
        %272 = vperm.xlu0 %271, %v235
        %v273 = vpop.permute.xlu0 %272
        %274 = vset.pattern.permute.xlu0 0
        %275 = vperm.xlu0 %274, %v236
        %v276 = vpop.permute.xlu0 %275
        %277 = vset.pattern.permute.xlu0 0
        %278 = vperm.xlu0 %277, %v237
        %v279 = vpop.permute.xlu0 %278
        %280 = vset.pattern.permute.xlu0 0
        %281 = vperm.xlu0 %280, %v238
        %v282 = vpop.permute.xlu0 %281
        %283 = vset.pattern.permute.xlu0 0
        %284 = vperm.xlu0 %283, %v239
        %v285 = vpop.permute.xlu0 %284
        %286 = vset.pattern.permute.xlu0 0
        %287 = vperm.xlu0 %286, %v240
        %v288 = vpop.permute.xlu0 %287
        %289 = vset.pattern.permute.xlu0 0
        %290 = vperm.xlu0 %289, %v241
        %v291 = vpop.permute.xlu0 %290
        %vm292 = vcmp.eq.s32.totalorder %v243, %v246
        %vm293 = vcmp.eq.s32.totalorder %v243, %v249
        %vm294 = vcmp.eq.s32.totalorder %v243, %v252
        %vm295 = vcmp.eq.s32.totalorder %v243, %v255
        %vm296 = vcmp.eq.s32.totalorder %v243, %v258
        %vm297 = vcmp.eq.s32.totalorder %v243, %v261
        %vm298 = vcmp.eq.s32.totalorder %v243, %v264
        %vm299 = vcmp.eq.s32.totalorder %v243, %v267
        %vm300 = vcmp.eq.s32.totalorder %v243, %v270
        %vm301 = vcmp.eq.s32.totalorder %v243, %v273
        %vm302 = vcmp.eq.s32.totalorder %v243, %v276
        %vm303 = vcmp.eq.s32.totalorder %v243, %v279
        %vm304 = vcmp.eq.s32.totalorder %v243, %v282
        %vm305 = vcmp.eq.s32.totalorder %v243, %v285
        %vm306 = vcmp.eq.s32.totalorder %v243, %v288
        %vm307 = vcmp.eq.s32.totalorder %v243, %v291
        %v308 = vsel %vm292, 1, 0
        %v309 = vsel %vm293, 1, 0
        %v310 = vsel %vm294, 1, 0
        %v311 = vsel %vm295, 1, 0
        %v312 = vsel %vm296, 1, 0
        %v313 = vsel %vm297, 1, 0
        %v314 = vsel %vm298, 1, 0
        %v315 = vsel %vm299, 1, 0
        %v316 = vsel %vm300, 1, 0
        %v317 = vsel %vm301, 1, 0
        %v318 = vsel %vm302, 1, 0
        %v319 = vsel %vm303, 1, 0
        %v320 = vsel %vm304, 1, 0
        %v321 = vsel %vm305, 1, 0
        %v322 = vsel %vm306, 1, 0
        %v323 = vsel %vm307, 1, 0
        %v324 = vcvt.s32.f32 %v308
        %v325 = vcvt.s32.f32 %v309
        %v326 = vcvt.s32.f32 %v310
        %v327 = vcvt.s32.f32 %v311
        %v328 = vcvt.s32.f32 %v312
        %v329 = vcvt.s32.f32 %v313
        %v330 = vcvt.s32.f32 %v314
        %v331 = vcvt.s32.f32 %v315
        %v332 = vcvt.s32.f32 %v316
        %v333 = vcvt.s32.f32 %v317
        %v334 = vcvt.s32.f32 %v318
        %v335 = vcvt.s32.f32 %v319
        %v336 = vcvt.s32.f32 %v320
        %v337 = vcvt.s32.f32 %v321
        %v338 = vcvt.s32.f32 %v322
        %v339 = vcvt.s32.f32 %v323
        %v340 = vadd.f32 %v324, 0.0
        %v341 = vadd.f32 %v325, 0.0
        %v342 = vadd.f32 %v326, 0.0
        %v343 = vadd.f32 %v327, 0.0
        %v344 = vadd.f32 %v328, 0.0
        %v345 = vadd.f32 %v329, 0.0
        %v346 = vadd.f32 %v330, 0.0
        %v347 = vadd.f32 %v331, 0.0
        %v348 = vadd.f32 %v332, 0.0
        %v349 = vadd.f32 %v333, 0.0
        %v350 = vadd.f32 %v334, 0.0
        %v351 = vadd.f32 %v335, 0.0
        %v352 = vadd.f32 %v336, 0.0
        %v353 = vadd.f32 %v337, 0.0
        %v354 = vadd.f32 %v338, 0.0
        %v355 = vadd.f32 %v339, 0.0
        %v356 = vadd.s32 %v226, 64
        %v357 = vadd.s32 %v227, 64
        %v358 = vadd.s32 %v228, 64
        %v359 = vadd.s32 %v229, 64
        %v360 = vadd.s32 %v230, 64
        %v361 = vadd.s32 %v231, 64
        %v362 = vadd.s32 %v232, 64
        %v363 = vadd.s32 %v233, 64
        %v364 = vadd.s32 %v234, 64
        %v365 = vadd.s32 %v235, 64
        %v366 = vadd.s32 %v236, 64
        %v367 = vadd.s32 %v237, 64
        %v368 = vadd.s32 %v238, 64
        %v369 = vadd.s32 %v239, 64
        %v370 = vadd.s32 %v240, 64
        %v371 = vadd.s32 %v241, 64
        %372 = vset.pattern.permute.xlu0 1
        %373 = vperm.xlu0 %372, %v356
        %v374 = vpop.permute.xlu0 %373
        %375 = vset.pattern.permute.xlu0 1
        %376 = vperm.xlu0 %375, %v357
        %v377 = vpop.permute.xlu0 %376
        %378 = vset.pattern.permute.xlu0 1
        %379 = vperm.xlu0 %378, %v358
        %v380 = vpop.permute.xlu0 %379
        %381 = vset.pattern.permute.xlu0 1
        %382 = vperm.xlu0 %381, %v359
        %v383 = vpop.permute.xlu0 %382
        %384 = vset.pattern.permute.xlu0 1
        %385 = vperm.xlu0 %384, %v360
        %v386 = vpop.permute.xlu0 %385
        %387 = vset.pattern.permute.xlu0 1
        %388 = vperm.xlu0 %387, %v361
        %v389 = vpop.permute.xlu0 %388
        %390 = vset.pattern.permute.xlu0 1
        %391 = vperm.xlu0 %390, %v362
        %v392 = vpop.permute.xlu0 %391
        %393 = vset.pattern.permute.xlu0 1
        %394 = vperm.xlu0 %393, %v363
        %v395 = vpop.permute.xlu0 %394
        %396 = vset.pattern.permute.xlu0 1
        %397 = vperm.xlu0 %396, %v364
        %v398 = vpop.permute.xlu0 %397
        %399 = vset.pattern.permute.xlu0 1
        %400 = vperm.xlu0 %399, %v365
        %v401 = vpop.permute.xlu0 %400
        %402 = vset.pattern.permute.xlu0 1
        %403 = vperm.xlu0 %402, %v366
        %v404 = vpop.permute.xlu0 %403
        %405 = vset.pattern.permute.xlu0 1
        %406 = vperm.xlu0 %405, %v367
        %v407 = vpop.permute.xlu0 %406
        %408 = vset.pattern.permute.xlu0 1
        %409 = vperm.xlu0 %408, %v368
        %v410 = vpop.permute.xlu0 %409
        %411 = vset.pattern.permute.xlu0 1
        %412 = vperm.xlu0 %411, %v369
        %v413 = vpop.permute.xlu0 %412
        %414 = vset.pattern.permute.xlu0 1
        %415 = vperm.xlu0 %414, %v370
        %v416 = vpop.permute.xlu0 %415
        %417 = vset.pattern.permute.xlu0 1
        %418 = vperm.xlu0 %417, %v371
        %v419 = vpop.permute.xlu0 %418
        %vm420 = vcmp.eq.s32.totalorder %v243, %v374
        %vm421 = vcmp.eq.s32.totalorder %v243, %v377
        %vm422 = vcmp.eq.s32.totalorder %v243, %v380
        %vm423 = vcmp.eq.s32.totalorder %v243, %v383
        %vm424 = vcmp.eq.s32.totalorder %v243, %v386
        %vm425 = vcmp.eq.s32.totalorder %v243, %v389
        %vm426 = vcmp.eq.s32.totalorder %v243, %v392
        %vm427 = vcmp.eq.s32.totalorder %v243, %v395
        %vm428 = vcmp.eq.s32.totalorder %v243, %v398
        %vm429 = vcmp.eq.s32.totalorder %v243, %v401
        %vm430 = vcmp.eq.s32.totalorder %v243, %v404
        %vm431 = vcmp.eq.s32.totalorder %v243, %v407
        %vm432 = vcmp.eq.s32.totalorder %v243, %v410
        %vm433 = vcmp.eq.s32.totalorder %v243, %v413
        %vm434 = vcmp.eq.s32.totalorder %v243, %v416
        %vm435 = vcmp.eq.s32.totalorder %v243, %v419
        %v436 = vsel %vm420, 1, 0
        %v437 = vsel %vm421, 1, 0
        %v438 = vsel %vm422, 1, 0
        %v439 = vsel %vm423, 1, 0
        %v440 = vsel %vm424, 1, 0
        %v441 = vsel %vm425, 1, 0
        %v442 = vsel %vm426, 1, 0
        %v443 = vsel %vm427, 1, 0
        %v444 = vsel %vm428, 1, 0
        %v445 = vsel %vm429, 1, 0
        %v446 = vsel %vm430, 1, 0
        %v447 = vsel %vm431, 1, 0
        %v448 = vsel %vm432, 1, 0
        %v449 = vsel %vm433, 1, 0
        %v450 = vsel %vm434, 1, 0
        %v451 = vsel %vm435, 1, 0
        %v452 = vcvt.s32.f32 %v436
        %v453 = vcvt.s32.f32 %v437
        %v454 = vcvt.s32.f32 %v438
        %v455 = vcvt.s32.f32 %v439
        %v456 = vcvt.s32.f32 %v440
        %v457 = vcvt.s32.f32 %v441
        %v458 = vcvt.s32.f32 %v442
        %v459 = vcvt.s32.f32 %v443
        %v460 = vcvt.s32.f32 %v444
        %v461 = vcvt.s32.f32 %v445
        %v462 = vcvt.s32.f32 %v446
        %v463 = vcvt.s32.f32 %v447
        %v464 = vcvt.s32.f32 %v448
        %v465 = vcvt.s32.f32 %v449
        %v466 = vcvt.s32.f32 %v450
        %v467 = vcvt.s32.f32 %v451
        %v468 = vadd.f32 %v340, %v452
        %v469 = vadd.f32 %v341, %v453
        %v470 = vadd.f32 %v342, %v454
        %v471 = vadd.f32 %v343, %v455
        %v472 = vadd.f32 %v344, %v456
        %v473 = vadd.f32 %v345, %v457
        %v474 = vadd.f32 %v346, %v458
        %v475 = vadd.f32 %v347, %v459
        %v476 = vadd.f32 %v348, %v460
        %v477 = vadd.f32 %v349, %v461
        %v478 = vadd.f32 %v350, %v462
        %v479 = vadd.f32 %v351, %v463
        %v480 = vadd.f32 %v352, %v464
        %v481 = vadd.f32 %v353, %v465
        %v482 = vadd.f32 %v354, %v466
        %v483 = vadd.f32 %v355, %v467
        %v484 = vld [vmem:[%s1] sm:$0xff]
        %v485 = vld [vmem:[%s1 + $0x8] sm:$0xff]
        %v486 = vld [vmem:[%s1 + $0x10] sm:$0xff]
        %v487 = vld [vmem:[%s1 + $0x18] sm:$0xff]
        %v488 = vld [vmem:[%s1 + $0x20] sm:$0xff]
        %v489 = vld [vmem:[%s1 + $0x28] sm:$0xff]
        %v490 = vld [vmem:[%s1 + $0x30] sm:$0xff]
        %v491 = vld [vmem:[%s1 + $0x38] sm:$0xff]
        %v492 = vld [vmem:[%s1 + $0x40] sm:$0xff]
        %v493 = vld [vmem:[%s1 + $0x48] sm:$0xff]
        %v494 = vld [vmem:[%s1 + $0x50] sm:$0xff]
        %v495 = vld [vmem:[%s1 + $0x58] sm:$0xff]
        %v496 = vld [vmem:[%s1 + $0x60] sm:$0xff]
        %v497 = vld [vmem:[%s1 + $0x68] sm:$0xff]
        %v498 = vld [vmem:[%s1 + $0x70] sm:$0xff]
        %v499 = vld [vmem:[%s1 + $0x78] sm:$0xff]
        %v500 = vld [vmem:[%s2] sm:$0x1]
        %v502 = vlaneseq
        %v503 = vshrl.u32 %v502, 7
        %v504 = vsub.s32 0, %v503
        %v505 = vrot.slane %v500, %v504
        %507 = vmatprep.subr.mxu0 0.0
        %508 = vmatpush1.msra.mxu0 %v484
        %509 = vmatprep.subr.mxu0 0.0
        %510 = vmatpush1.msra.mxu0 %v485
        %511 = vmatprep.subr.mxu0 0.0
        %512 = vmatpush1.msra.mxu0 %v486
        %513 = vmatprep.subr.mxu0 0.0
        %514 = vmatpush1.msra.mxu0 %v487
        %515 = vmatprep.subr.mxu0 0.0
        %516 = vmatpush1.msra.mxu0 %v488
        %517 = vmatprep.subr.mxu0 0.0
        %518 = vmatpush1.msra.mxu0 %v489
        %519 = vmatprep.subr.mxu0 0.0
        %520 = vmatpush1.msra.mxu0 %v490
        %521 = vmatprep.subr.mxu0 0.0
        %522 = vmatpush1.msra.mxu0 %v491
        %523 = vmatprep.subr.mxu0 0.0
        %524 = vmatpush1.msra.mxu0 %v492
        %525 = vmatprep.subr.mxu0 0.0
        %526 = vmatpush1.msra.mxu0 %v493
        %527 = vmatprep.subr.mxu0 0.0
        %528 = vmatpush1.msra.mxu0 %v494
        %529 = vmatprep.subr.mxu0 0.0
        %530 = vmatpush1.msra.mxu0 %v495
        %531 = vmatprep.subr.mxu0 0.0
        %532 = vmatpush1.msra.mxu0 %v496
        %533 = vmatprep.subr.mxu0 0.0
        %534 = vmatpush1.msra.mxu0 %v497
        %535 = vmatprep.subr.mxu0 0.0
        %536 = vmatpush1.msra.mxu0 %v498
        %537 = vmatprep.subr.mxu0 0.0
        %538 = vmatpush1.msra.mxu0 %v499
        %539 = vmatprep.subr.mxu0 0.0
        %540 = vmatpush1.msra.mxu0 0.0
        %541 = vmatprep.subr.mxu0 0.0
        %542 = vmatpush1.msra.mxu0 0.0
        %543 = vmatprep.subr.mxu0 0.0
        %544 = vmatpush1.msra.mxu0 0.0
        %545 = vmatprep.subr.mxu0 0.0
        %546 = vmatpush1.msra.mxu0 0.0
        %547 = vmatprep.subr.mxu0 0.0
        %548 = vmatpush1.msra.mxu0 0.0
        %549 = vmatprep.subr.mxu0 0.0
        %550 = vmatpush1.msra.mxu0 0.0
        %551 = vmatprep.subr.mxu0 0.0
        %552 = vmatpush1.msra.mxu0 0.0
        %553 = vmatprep.subr.mxu0 0.0
        %554 = vmatpush1.msra.mxu0 0.0
        %555 = vmatprep.subr.mxu0 0.0
        %556 = vmatpush1.msra.mxu0 0.0
        %557 = vmatprep.subr.mxu0 0.0
        %558 = vmatpush1.msra.mxu0 0.0
        %559 = vmatprep.subr.mxu0 0.0
        %560 = vmatpush1.msra.mxu0 0.0
        %561 = vmatprep.subr.mxu0 0.0
        %562 = vmatpush1.msra.mxu0 0.0
        %563 = vmatprep.subr.mxu0 0.0
        %564 = vmatpush1.msra.mxu0 0.0
        %565 = vmatprep.subr.mxu0 0.0
        %566 = vmatpush1.msra.mxu0 0.0
        %567 = vmatprep.subr.mxu0 0.0
        %568 = vmatpush1.msra.mxu0 0.0
        %569 = vmatprep.subr.mxu0 0.0
        %570 = vmatpush1.msra.mxu0 0.0
        %571 = vmatprep.mubr.f32.mxu0 0.0
        %572 = vmatmul.mubr.f32.gmra.mrb[0].mxu0 %v468
        %v573 = vpop.f32.mrb[0].mxu0
        %v574 = vadd.f32 %v505, %v573
        %v575 = vpop.f32.mrb[0].mxu0
        %576 = vmatprep.mubr.f32.mxu0 0.0
        %577 = vmatmul.mubr.f32.gmra.mrb[0].mxu0 %v469
        %v578 = vpop.f32.mrb[0].mxu0
        %v579 = vadd.f32 %v505, %v578
        %v580 = vpop.f32.mrb[0].mxu0
        %581 = vmatprep.mubr.f32.mxu0 0.0
        %582 = vmatmul.mubr.f32.gmra.mrb[0].mxu0 %v470
        %v583 = vpop.f32.mrb[0].mxu0
        %v584 = vadd.f32 %v505, %v583
        %v585 = vpop.f32.mrb[0].mxu0
        %586 = vmatprep.mubr.f32.mxu0 0.0
        %587 = vmatmul.mubr.f32.gmra.mrb[0].mxu0 %v471
        %v588 = vpop.f32.mrb[0].mxu0
        %v589 = vadd.f32 %v505, %v588
        %v590 = vpop.f32.mrb[0].mxu0
        %591 = vmatprep.mubr.f32.mxu0 0.0
        %592 = vmatmul.mubr.f32.gmra.mrb[0].mxu0 %v472
        %v593 = vpop.f32.mrb[0].mxu0
        %v594 = vadd.f32 %v505, %v593
        %v595 = vpop.f32.mrb[0].mxu0
        %596 = vmatprep.mubr.f32.mxu0 0.0
        %597 = vmatmul.mubr.f32.gmra.mrb[0].mxu0 %v473
        %v598 = vpop.f32.mrb[0].mxu0
        %v599 = vadd.f32 %v505, %v598
        %v600 = vpop.f32.mrb[0].mxu0
        %601 = vmatprep.mubr.f32.mxu0 0.0
        %602 = vmatmul.mubr.f32.gmra.mrb[0].mxu0 %v474
        %v603 = vpop.f32.mrb[0].mxu0
        %v604 = vadd.f32 %v505, %v603
        %v605 = vpop.f32.mrb[0].mxu0
        %606 = vmatprep.mubr.f32.mxu0 0.0
        %607 = vmatmul.mubr.f32.gmra.mrb[0].mxu0 %v475
        %v608 = vpop.f32.mrb[0].mxu0
        %v609 = vadd.f32 %v505, %v608
        %v610 = vpop.f32.mrb[0].mxu0
        %611 = vmatprep.mubr.f32.mxu0 0.0
        %612 = vmatmul.mubr.f32.gmra.mrb[0].mxu0 %v476
        %v613 = vpop.f32.mrb[0].mxu0
        %v614 = vadd.f32 %v505, %v613
        %v615 = vpop.f32.mrb[0].mxu0
        %616 = vmatprep.mubr.f32.mxu0 0.0
        %617 = vmatmul.mubr.f32.gmra.mrb[0].mxu0 %v477
        %v618 = vpop.f32.mrb[0].mxu0
        %v619 = vadd.f32 %v505, %v618
        %v620 = vpop.f32.mrb[0].mxu0
        %621 = vmatprep.mubr.f32.mxu0 0.0
        %622 = vmatmul.mubr.f32.gmra.mrb[0].mxu0 %v478
        %v623 = vpop.f32.mrb[0].mxu0
        %v624 = vadd.f32 %v505, %v623
        %v625 = vpop.f32.mrb[0].mxu0
        %626 = vmatprep.mubr.f32.mxu0 0.0
        %627 = vmatmul.mubr.f32.gmra.mrb[0].mxu0 %v479
        %v628 = vpop.f32.mrb[0].mxu0
        %v629 = vadd.f32 %v505, %v628
        %v630 = vpop.f32.mrb[0].mxu0
        %631 = vmatprep.mubr.f32.mxu0 0.0
        %632 = vmatmul.mubr.f32.gmra.mrb[0].mxu0 %v480
        %v633 = vpop.f32.mrb[0].mxu0
        %v634 = vadd.f32 %v505, %v633
        %v635 = vpop.f32.mrb[0].mxu0
        %636 = vmatprep.mubr.f32.mxu0 0.0
        %637 = vmatmul.mubr.f32.gmra.mrb[0].mxu0 %v481
        %v638 = vpop.f32.mrb[0].mxu0
        %v639 = vadd.f32 %v505, %v638
        %v640 = vpop.f32.mrb[0].mxu0
        %641 = vmatprep.mubr.f32.mxu0 0.0
        %642 = vmatmul.mubr.f32.gmra.mrb[0].mxu0 %v482
        %v643 = vpop.f32.mrb[0].mxu0
        %v644 = vadd.f32 %v505, %v643
        %v645 = vpop.f32.mrb[0].mxu0
        %646 = vmatprep.mubr.f32.mxu0 0.0
        %647 = vmatmul.mubr.f32.gmra.mrb[0].mxu0 %v483
        %v648 = vpop.f32.mrb[0].mxu0
        %v649 = vadd.f32 %v505, %v648
        %v650 = vpop.f32.mrb[0].mxu0
        %651 = vdwg.mxu0
        %v652 = vmax.f32 %v574, 0.0
        %v653 = vmax.f32 %v579, 0.0
        %v654 = vmax.f32 %v584, 0.0
        %v655 = vmax.f32 %v589, 0.0
        %v656 = vmax.f32 %v594, 0.0
        %v657 = vmax.f32 %v599, 0.0
        %v658 = vmax.f32 %v604, 0.0
        %v659 = vmax.f32 %v609, 0.0
        %v660 = vmax.f32 %v614, 0.0
        %v661 = vmax.f32 %v619, 0.0
        %v662 = vmax.f32 %v624, 0.0
        %v663 = vmax.f32 %v629, 0.0
        %v664 = vmax.f32 %v634, 0.0
        %v665 = vmax.f32 %v639, 0.0
        %v666 = vmax.f32 %v644, 0.0
        %v667 = vmax.f32 %v649, 0.0
        %v668 = vld [vmem:[%s3] sm:$0xff]
        %v669 = vld [vmem:[%s3 + $0x8] sm:$0xff]
        %v670 = vld [vmem:[%s3 + $0x10] sm:$0xff]
        %v671 = vld [vmem:[%s3 + $0x18] sm:$0xff]
        %v672 = vld [vmem:[%s3 + $0x20] sm:$0xff]
        %v673 = vld [vmem:[%s3 + $0x28] sm:$0xff]
        %v674 = vld [vmem:[%s3 + $0x30] sm:$0xff]
        %v675 = vld [vmem:[%s3 + $0x38] sm:$0xff]
        %v676 = vld [vmem:[%s3 + $0x40] sm:$0xff]
        %v677 = vld [vmem:[%s3 + $0x48] sm:$0xff]
        %v678 = vld [vmem:[%s3 + $0x50] sm:$0xff]
        %v679 = vld [vmem:[%s3 + $0x58] sm:$0xff]
        %v680 = vld [vmem:[%s3 + $0x60] sm:$0xff]
        %v681 = vld [vmem:[%s3 + $0x68] sm:$0xff]
        %v682 = vld [vmem:[%s3 + $0x70] sm:$0xff]
        %v683 = vld [vmem:[%s3 + $0x78] sm:$0xff]
        %v684 = vld [vmem:[%s4] sm:$0x1]
        %v686 = vlaneseq
        %v687 = vshrl.u32 %v686, 7
        %v688 = vsub.s32 0, %v687
        %v689 = vrot.slane %v684, %v688
        %691 = vmatprep.subr.mxu0 0.0
        %692 = vmatpush1.msra.mxu0 %v668
        %693 = vmatprep.subr.mxu0 0.0
        %694 = vmatpush1.msra.mxu0 %v669
        %695 = vmatprep.subr.mxu0 0.0
        %696 = vmatpush1.msra.mxu0 %v670
        %697 = vmatprep.subr.mxu0 0.0
        %698 = vmatpush1.msra.mxu0 %v671
        %699 = vmatprep.subr.mxu0 0.0
        %700 = vmatpush1.msra.mxu0 %v672
        %701 = vmatprep.subr.mxu0 0.0
        %702 = vmatpush1.msra.mxu0 %v673
        %703 = vmatprep.subr.mxu0 0.0
        %704 = vmatpush1.msra.mxu0 %v674
        %705 = vmatprep.subr.mxu0 0.0
        %706 = vmatpush1.msra.mxu0 %v675
        %707 = vmatprep.subr.mxu0 0.0
        %708 = vmatpush1.msra.mxu0 %v676
        %709 = vmatprep.subr.mxu0 0.0
        %710 = vmatpush1.msra.mxu0 %v677
        %711 = vmatprep.subr.mxu0 0.0
        %712 = vmatpush1.msra.mxu0 %v678
        %713 = vmatprep.subr.mxu0 0.0
        %714 = vmatpush1.msra.mxu0 %v679
        %715 = vmatprep.subr.mxu0 0.0
        %716 = vmatpush1.msra.mxu0 %v680
        %717 = vmatprep.subr.mxu0 0.0
        %718 = vmatpush1.msra.mxu0 %v681
        %719 = vmatprep.subr.mxu0 0.0
        %720 = vmatpush1.msra.mxu0 %v682
        %721 = vmatprep.subr.mxu0 0.0
        %722 = vmatpush1.msra.mxu0 %v683
        %723 = vmatprep.subr.mxu0 0.0
        %724 = vmatpush1.msra.mxu0 0.0
        %725 = vmatprep.subr.mxu0 0.0
        %726 = vmatpush1.msra.mxu0 0.0
        %727 = vmatprep.subr.mxu0 0.0
        %728 = vmatpush1.msra.mxu0 0.0
        %729 = vmatprep.subr.mxu0 0.0
        %730 = vmatpush1.msra.mxu0 0.0
        %731 = vmatprep.subr.mxu0 0.0
        %732 = vmatpush1.msra.mxu0 0.0
        %733 = vmatprep.subr.mxu0 0.0
        %734 = vmatpush1.msra.mxu0 0.0
        %735 = vmatprep.subr.mxu0 0.0
        %736 = vmatpush1.msra.mxu0 0.0
        %737 = vmatprep.subr.mxu0 0.0
        %738 = vmatpush1.msra.mxu0 0.0
        %739 = vmatprep.subr.mxu0 0.0
        %740 = vmatpush1.msra.mxu0 0.0
        %741 = vmatprep.subr.mxu0 0.0
        %742 = vmatpush1.msra.mxu0 0.0
        %743 = vmatprep.subr.mxu0 0.0
        %744 = vmatpush1.msra.mxu0 0.0
        %745 = vmatprep.subr.mxu0 0.0
        %746 = vmatpush1.msra.mxu0 0.0
        %747 = vmatprep.subr.mxu0 0.0
        %748 = vmatpush1.msra.mxu0 0.0
        %749 = vmatprep.subr.mxu0 0.0
        %750 = vmatpush1.msra.mxu0 0.0
        %751 = vmatprep.subr.mxu0 0.0
        %752 = vmatpush1.msra.mxu0 0.0
        %753 = vmatprep.subr.mxu0 0.0
        %754 = vmatpush1.msra.mxu0 0.0
        %755 = vmatprep.mubr.f32.mxu0 0.0
        %756 = vmatmul.mubr.f32.gmra.mrb[0].mxu0 %v652
        %v757 = vpop.f32.mrb[0].mxu0
        %v758 = vadd.f32 %v689, %v757
        %v759 = vpop.f32.mrb[0].mxu0
        %760 = vmatprep.mubr.f32.mxu0 0.0
        %761 = vmatmul.mubr.f32.gmra.mrb[0].mxu0 %v653
        %v762 = vpop.f32.mrb[0].mxu0
        %v763 = vadd.f32 %v689, %v762
        %v764 = vpop.f32.mrb[0].mxu0
        %765 = vmatprep.mubr.f32.mxu0 0.0
        %766 = vmatmul.mubr.f32.gmra.mrb[0].mxu0 %v654
        %v767 = vpop.f32.mrb[0].mxu0
        %v768 = vadd.f32 %v689, %v767
        %v769 = vpop.f32.mrb[0].mxu0
        %770 = vmatprep.mubr.f32.mxu0 0.0
        %771 = vmatmul.mubr.f32.gmra.mrb[0].mxu0 %v655
        %v772 = vpop.f32.mrb[0].mxu0
        %v773 = vadd.f32 %v689, %v772
        %v774 = vpop.f32.mrb[0].mxu0
        %775 = vmatprep.mubr.f32.mxu0 0.0
        %776 = vmatmul.mubr.f32.gmra.mrb[0].mxu0 %v656
        %v777 = vpop.f32.mrb[0].mxu0
        %v778 = vadd.f32 %v689, %v777
        %v779 = vpop.f32.mrb[0].mxu0
        %780 = vmatprep.mubr.f32.mxu0 0.0
        %781 = vmatmul.mubr.f32.gmra.mrb[0].mxu0 %v657
        %v782 = vpop.f32.mrb[0].mxu0
        %v783 = vadd.f32 %v689, %v782
        %v784 = vpop.f32.mrb[0].mxu0
        %785 = vmatprep.mubr.f32.mxu0 0.0
        %786 = vmatmul.mubr.f32.gmra.mrb[0].mxu0 %v658
        %v787 = vpop.f32.mrb[0].mxu0
        %v788 = vadd.f32 %v689, %v787
        %v789 = vpop.f32.mrb[0].mxu0
        %790 = vmatprep.mubr.f32.mxu0 0.0
        %791 = vmatmul.mubr.f32.gmra.mrb[0].mxu0 %v659
        %v792 = vpop.f32.mrb[0].mxu0
        %v793 = vadd.f32 %v689, %v792
        %v794 = vpop.f32.mrb[0].mxu0
        %795 = vmatprep.mubr.f32.mxu0 0.0
        %796 = vmatmul.mubr.f32.gmra.mrb[0].mxu0 %v660
        %v797 = vpop.f32.mrb[0].mxu0
        %v798 = vadd.f32 %v689, %v797
        %v799 = vpop.f32.mrb[0].mxu0
        %800 = vmatprep.mubr.f32.mxu0 0.0
        %801 = vmatmul.mubr.f32.gmra.mrb[0].mxu0 %v661
        %v802 = vpop.f32.mrb[0].mxu0
        %v803 = vadd.f32 %v689, %v802
        %v804 = vpop.f32.mrb[0].mxu0
        %805 = vmatprep.mubr.f32.mxu0 0.0
        %806 = vmatmul.mubr.f32.gmra.mrb[0].mxu0 %v662
        %v807 = vpop.f32.mrb[0].mxu0
        %v808 = vadd.f32 %v689, %v807
        %v809 = vpop.f32.mrb[0].mxu0
        %810 = vmatprep.mubr.f32.mxu0 0.0
        %811 = vmatmul.mubr.f32.gmra.mrb[0].mxu0 %v663
        %v812 = vpop.f32.mrb[0].mxu0
        %v813 = vadd.f32 %v689, %v812
        %v814 = vpop.f32.mrb[0].mxu0
        %815 = vmatprep.mubr.f32.mxu0 0.0
        %816 = vmatmul.mubr.f32.gmra.mrb[0].mxu0 %v664
        %v817 = vpop.f32.mrb[0].mxu0
        %v818 = vadd.f32 %v689, %v817
        %v819 = vpop.f32.mrb[0].mxu0
        %820 = vmatprep.mubr.f32.mxu0 0.0
        %821 = vmatmul.mubr.f32.gmra.mrb[0].mxu0 %v665
        %v822 = vpop.f32.mrb[0].mxu0
        %v823 = vadd.f32 %v689, %v822
        %v824 = vpop.f32.mrb[0].mxu0
        %825 = vmatprep.mubr.f32.mxu0 0.0
        %826 = vmatmul.mubr.f32.gmra.mrb[0].mxu0 %v666
        %v827 = vpop.f32.mrb[0].mxu0
        %v828 = vadd.f32 %v689, %v827
        %v829 = vpop.f32.mrb[0].mxu0
        %830 = vmatprep.mubr.f32.mxu0 0.0
        %831 = vmatmul.mubr.f32.gmra.mrb[0].mxu0 %v667
        %v832 = vpop.f32.mrb[0].mxu0
        %v833 = vadd.f32 %v689, %v832
        %v834 = vpop.f32.mrb[0].mxu0
        %835 = vdwg.mxu0
        %836 = vmax.xlane.f32.xlu0 %v758
        %v837 = vpop.xlane.xlu0 %836
        %838 = vmax.xlane.f32.xlu0 %v763
        %v839 = vpop.xlane.xlu0 %838
        %840 = vmax.xlane.f32.xlu0 %v768
        %v841 = vpop.xlane.xlu0 %840
        %842 = vmax.xlane.f32.xlu0 %v773
        %v843 = vpop.xlane.xlu0 %842
        %844 = vmax.xlane.f32.xlu0 %v778
        %v845 = vpop.xlane.xlu0 %844
        %846 = vmax.xlane.f32.xlu0 %v783
        %v847 = vpop.xlane.xlu0 %846
        %848 = vmax.xlane.f32.xlu0 %v788
        %v849 = vpop.xlane.xlu0 %848
        %850 = vmax.xlane.f32.xlu0 %v793
        %v851 = vpop.xlane.xlu0 %850
        %852 = vmax.xlane.f32.xlu0 %v798
        %v853 = vpop.xlane.xlu0 %852
        %854 = vmax.xlane.f32.xlu0 %v803
        %v855 = vpop.xlane.xlu0 %854
        %856 = vmax.xlane.f32.xlu0 %v808
        %v857 = vpop.xlane.xlu0 %856
        %858 = vmax.xlane.f32.xlu0 %v813
        %v859 = vpop.xlane.xlu0 %858
        %860 = vmax.xlane.f32.xlu0 %v818
        %v861 = vpop.xlane.xlu0 %860
        %862 = vmax.xlane.f32.xlu0 %v823
        %v863 = vpop.xlane.xlu0 %862
        %864 = vmax.xlane.f32.xlu0 %v828
        %v865 = vpop.xlane.xlu0 %864
        %866 = vmax.xlane.f32.xlu0 %v833
        %v867 = vpop.xlane.xlu0 %866
        %v868 = vsub.f32 %v758, %v837
        %v869 = vsub.f32 %v763, %v839
        %v870 = vsub.f32 %v768, %v841
        %v871 = vsub.f32 %v773, %v843
        %v872 = vsub.f32 %v778, %v845
        %v873 = vsub.f32 %v783, %v847
        %v874 = vsub.f32 %v788, %v849
        %v875 = vsub.f32 %v793, %v851
        %v876 = vsub.f32 %v798, %v853
        %v877 = vsub.f32 %v803, %v855
        %v878 = vsub.f32 %v808, %v857
        %v879 = vsub.f32 %v813, %v859
        %v880 = vsub.f32 %v818, %v861
        %v881 = vsub.f32 %v823, %v863
        %v882 = vsub.f32 %v828, %v865
        %v883 = vsub.f32 %v833, %v867
        %v884 = vmul.f32 %v868, 1.442695
        %v885 = vpow.pop %v884
        %v886 = vmul.f32 %v869, 1.442695
        %v887 = vpow.pop %v886
        %v888 = vmul.f32 %v870, 1.442695
        %v889 = vpow.pop %v888
        %v890 = vmul.f32 %v871, 1.442695
        %v891 = vpow.pop %v890
        %v892 = vmul.f32 %v872, 1.442695
        %v893 = vpow.pop %v892
        %v894 = vmul.f32 %v873, 1.442695
        %v895 = vpow.pop %v894
        %v896 = vmul.f32 %v874, 1.442695
        %v897 = vpow.pop %v896
        %v898 = vmul.f32 %v875, 1.442695
        %v899 = vpow.pop %v898
        %v900 = vmul.f32 %v876, 1.442695
        %v901 = vpow.pop %v900
        %v902 = vmul.f32 %v877, 1.442695
        %v903 = vpow.pop %v902
        %v904 = vmul.f32 %v878, 1.442695
        %v905 = vpow.pop %v904
        %v906 = vmul.f32 %v879, 1.442695
        %v907 = vpow.pop %v906
        %v908 = vmul.f32 %v880, 1.442695
        %v909 = vpow.pop %v908
        %v910 = vmul.f32 %v881, 1.442695
        %v911 = vpow.pop %v910
        %v912 = vmul.f32 %v882, 1.442695
        %v913 = vpow.pop %v912
        %v914 = vmul.f32 %v883, 1.442695
        %v915 = vpow.pop %v914
        %916 = vadd.xlane.f32.xlu0 %v885
        %v917 = vpop.xlane.xlu0 %916
        %918 = vadd.xlane.f32.xlu0 %v887
        %v919 = vpop.xlane.xlu0 %918
        %920 = vadd.xlane.f32.xlu0 %v889
        %v921 = vpop.xlane.xlu0 %920
        %922 = vadd.xlane.f32.xlu0 %v891
        %v923 = vpop.xlane.xlu0 %922
        %924 = vadd.xlane.f32.xlu0 %v893
        %v925 = vpop.xlane.xlu0 %924
        %926 = vadd.xlane.f32.xlu0 %v895
        %v927 = vpop.xlane.xlu0 %926
        %928 = vadd.xlane.f32.xlu0 %v897
        %v929 = vpop.xlane.xlu0 %928
        %930 = vadd.xlane.f32.xlu0 %v899
        %v931 = vpop.xlane.xlu0 %930
        %932 = vadd.xlane.f32.xlu0 %v901
        %v933 = vpop.xlane.xlu0 %932
        %934 = vadd.xlane.f32.xlu0 %v903
        %v935 = vpop.xlane.xlu0 %934
        %936 = vadd.xlane.f32.xlu0 %v905
        %v937 = vpop.xlane.xlu0 %936
        %938 = vadd.xlane.f32.xlu0 %v907
        %v939 = vpop.xlane.xlu0 %938
        %940 = vadd.xlane.f32.xlu0 %v909
        %v941 = vpop.xlane.xlu0 %940
        %942 = vadd.xlane.f32.xlu0 %v911
        %v943 = vpop.xlane.xlu0 %942
        %944 = vadd.xlane.f32.xlu0 %v913
        %v945 = vpop.xlane.xlu0 %944
        %946 = vadd.xlane.f32.xlu0 %v915
        %v947 = vpop.xlane.xlu0 %946
        %v948 = vlog2.pop %v917
        %v949 = vmul.f32 %v948, 0.6931472
        %v950 = vlog2.pop %v919
        %v951 = vmul.f32 %v950, 0.6931472
        %v952 = vlog2.pop %v921
        %v953 = vmul.f32 %v952, 0.6931472
        %v954 = vlog2.pop %v923
        %v955 = vmul.f32 %v954, 0.6931472
        %v956 = vlog2.pop %v925
        %v957 = vmul.f32 %v956, 0.6931472
        %v958 = vlog2.pop %v927
        %v959 = vmul.f32 %v958, 0.6931472
        %v960 = vlog2.pop %v929
        %v961 = vmul.f32 %v960, 0.6931472
        %v962 = vlog2.pop %v931
        %v963 = vmul.f32 %v962, 0.6931472
        %v964 = vlog2.pop %v933
        %v965 = vmul.f32 %v964, 0.6931472
        %v966 = vlog2.pop %v935
        %v967 = vmul.f32 %v966, 0.6931472
        %v968 = vlog2.pop %v937
        %v969 = vmul.f32 %v968, 0.6931472
        %v970 = vlog2.pop %v939
        %v971 = vmul.f32 %v970, 0.6931472
        %v972 = vlog2.pop %v941
        %v973 = vmul.f32 %v972, 0.6931472
        %v974 = vlog2.pop %v943
        %v975 = vmul.f32 %v974, 0.6931472
        %v976 = vlog2.pop %v945
        %v977 = vmul.f32 %v976, 0.6931472
        %v978 = vlog2.pop %v947
        %v979 = vmul.f32 %v978, 0.6931472
        %v980 = vsub.f32 %v868, %v949
        %v981 = vsub.f32 %v869, %v951
        %v982 = vsub.f32 %v870, %v953
        %v983 = vsub.f32 %v871, %v955
        %v984 = vsub.f32 %v872, %v957
        %v985 = vsub.f32 %v873, %v959
        %v986 = vsub.f32 %v874, %v961
        %v987 = vsub.f32 %v875, %v963
        %v988 = vsub.f32 %v876, %v965
        %v989 = vsub.f32 %v877, %v967
        %v990 = vsub.f32 %v878, %v969
        %v991 = vsub.f32 %v879, %v971
        %v992 = vsub.f32 %v880, %v973
        %v993 = vsub.f32 %v881, %v975
        %v994 = vsub.f32 %v882, %v977
        %v995 = vsub.f32 %v883, %v979
        %996 = vst [vmem:[%s218] sm:$0xff] %v980
        %997 = vst [vmem:[%s218 + $0x8] sm:$0xff] %v981
        %998 = vst [vmem:[%s218 + $0x10] sm:$0xff] %v982
        %999 = vst [vmem:[%s218 + $0x18] sm:$0xff] %v983
        %1000 = vst [vmem:[%s218 + $0x20] sm:$0xff] %v984
        %1001 = vst [vmem:[%s218 + $0x28] sm:$0xff] %v985
        %1002 = vst [vmem:[%s218 + $0x30] sm:$0xff] %v986
        %1003 = vst [vmem:[%s218 + $0x38] sm:$0xff] %v987
        %1004 = vst [vmem:[%s218 + $0x40] sm:$0xff] %v988
        %1005 = vst [vmem:[%s218 + $0x48] sm:$0xff] %v989
        %1006 = vst [vmem:[%s218 + $0x50] sm:$0xff] %v990
        %1007 = vst [vmem:[%s218 + $0x58] sm:$0xff] %v991
        %1008 = vst [vmem:[%s218 + $0x60] sm:$0xff] %v992
        %1009 = vst [vmem:[%s218 + $0x68] sm:$0xff] %v993
        %1010 = vst [vmem:[%s218 + $0x70] sm:$0xff] %v994
        %1011 = vst [vmem:[%s218 + $0x78] sm:$0xff] %v995
        %s1012 = sand.u32 %s137, 1
        %s1013 = scalar_lea.sflag [#allocation3], %s1012
        %s1014 = sand.u32 %s137, 1
        %s1015 = smul.addr %s1014, 128
        %s1016 = scalar_lea.vmem [#allocation2], %s1015
        // Predicated region
        $region41: #{tpu_custom_call.1} parent=39 // pred_check
          %p1017 = pneg %p147
        $region42: #{tpu_custom_call.1} parent=39 // pred_check_branch
          %1019 = sbr.rel (%p1017) target = $region44
        $region43: #{tpu_custom_call.1} parent=39 // pred_region
          %s1020 = smul.u32 16, %s19
          %s1022 = ssub.s32 2048, 2048
          %1023 = vsyncadd %s1013, %s1022
          %s1024 = smul.addr %s1020, 128
          %s1025 = scalar_lea.hbm %s5, %s1024
          %s1026 = sshll.u32 %s1016, 4
          %s1027 = int_to_ptr.vmem [resolvable:$true] %s1026
          %1032 = dma.vmem_to_hbm [thread:$0]  %s1027, 2048, %s1025, %s1013, 128, 128, 8
        $region44: #{tpu_custom_call.1} parent=39 // pred_fallthru
          _
      $region40: #{tpu_custom_call.1} parent=5 // pred_fallthru
        _
      %p1033 = scmp.le.s32.totalorder 2, %s14
      // Predicated region
      $region45: #{tpu_custom_call.1} parent=5 // pred_check
        %p1034 = pneg %p1033
      $region46: #{tpu_custom_call.1} parent=5 // pred_check_branch
        %1036 = sbr.rel (%p1034) target = $region48
      $region47: #{tpu_custom_call.1} parent=5 // pred_region
        %s1037 = ssub.s32 %s14, 2
        // Predicated region
        $region49: #{tpu_custom_call.1} parent=47 // pred_check
          %p1038 = pneg %p153
        $region50: #{tpu_custom_call.1} parent=47 // pred_check_branch
          %1040 = sbr.rel (%p1038) target = $region52
        $region51: #{tpu_custom_call.1} parent=47 // pred_region
          %s1041 = sand.u32 %s138, 1
          %s1042 = scalar_lea.sflag [#allocation3], %s1041
          %s1043 = sand.u32 %s138, 1
          %s1044 = smul.addr %s1043, 128
          %s1045 = scalar_lea.vmem [#allocation2], %s1044
          %1046 = dma.done %s1042, 2048
        $region52: #{tpu_custom_call.1} parent=47 // pred_fallthru
          _
      $region48: #{tpu_custom_call.1} parent=5 // pred_fallthru
        _
    $region6: #{tpu_custom_call.1} parent=1 // loop_footer
      %s18 = sadd.s32 1, %s14
    $region7: #{tpu_custom_call.1} parent=1 // loop_footer_branch
      %13 = sbr.rel target = $region3
    $region8: #{tpu_custom_call.1} parent=1 // loop_exit
      _
    %1047 = vsyncpa [#allocation3], 1
    %s1048 = scalar_lea.sflag [#allocation3], 1
    %1049 = vsyncpa %s1048, 1

</llo_original>
